<compile_context>
chip_gen: v5e
topology: v5e:2x2
jax: 0.10.0
libtpu: 0.0.40
codegen_flags: <defaults>
</compile_context>

<pallas_src>
import jax
import jax.numpy as jnp
from jax.experimental import pallas as pl
from jax.experimental.pallas import tpu as pltpu


def _round_up(a, b):
    return (a + b - 1) // b * b


# -----------------------------------------------------------------------------
# Kernels
# -----------------------------------------------------------------------------
def _ffn_kernel_single(x_ref, w1_ref, b1_ref, w2_ref, b2_ref, o_ref):
    """Grid = (row tiles,). Full (Dp, Dp) weights are VMEM-resident; the output
    tile is computed and written directly (no scratch, no finalize pass)."""
    h = jnp.dot(x_ref[...], w1_ref[...], preferred_element_type=jnp.float32)
    h = jnp.maximum(h + b1_ref[...], 0.0)
    h2 = jnp.dot(h.astype(w2_ref.dtype), w2_ref[...],
                 preferred_element_type=jnp.float32)
    o_ref[...] = (h2 + b2_ref[...]).astype(o_ref.dtype)


def _ffn_kernel_tiled_f32(x_ref, w1_ref, b1_ref, w2_ref, b2_ref, o_ref):
    """Grid = (row tiles, hidden tiles), f32 output. Layer-2 partial products
    accumulate directly into the resident output tile; layer-2 bias is folded
    in on the first hidden step (no scratch, no extra store/load passes)."""
    k = pl.program_id(1)
    h = jnp.dot(x_ref[...], w1_ref[...], preferred_element_type=jnp.float32)
    h = jnp.maximum(h + b1_ref[...], 0.0)
    partial = jnp.dot(h.astype(w2_ref.dtype), w2_ref[...],
                      preferred_element_type=jnp.float32)

    @pl.when(k == 0)
    def _first():
        o_ref[...] = partial + b2_ref[...]

    @pl.when(k > 0)
    def _rest():
        o_ref[...] += partial


def _ffn_kernel_tiled_acc(x_ref, w1_ref, b1_ref, w2_ref, b2_ref, o_ref, acc_ref):
    """Grid = (row tiles, hidden tiles), non-f32 output. Accumulate in an f32
    VMEM scratch (direct assign at k==0 -> no zero-init pass), cast once."""
    k = pl.program_id(1)
    h = jnp.dot(x_ref[...], w1_ref[...], preferred_element_type=jnp.float32)
    h = jnp.maximum(h + b1_ref[...], 0.0)
    partial = jnp.dot(h.astype(w2_ref.dtype), w2_ref[...],
                      preferred_element_type=jnp.float32)

    @pl.when(k == 0)
    def _first():
        acc_ref[...] = partial

    @pl.when(k > 0)
    def _rest():
        acc_ref[...] += partial

    @pl.when(k == pl.num_programs(1) - 1)
    def _finalize():
        o_ref[...] = (acc_ref[...] + b2_ref[...]).astype(o_ref.dtype)


# -----------------------------------------------------------------------------
# Helpers
# -----------------------------------------------------------------------------
def _block_spec(shape, index_map, *, single_buffer=False):
    """BlockSpec; grid-invariant operands get a single (non-double) buffer."""
    if single_buffer:
        try:
            return pl.BlockSpec(shape, index_map, pipeline_mode=pl.Buffered(1))
        except TypeError:
            # Older jax without pipeline_mode: fall back to default buffering.
            pass
    return pl.BlockSpec(shape, index_map)


def _vmem_capacity_bytes():
    try:
        return int(pltpu.get_tpu_info().vmem_capacity_bytes)
    except Exception:
        return 64 * 1024 * 1024  # conservative fallback (v7x per-TC size)


def _vmem_estimate(tm, tk, Dp, csize, osize, single_k, use_acc):
    """Rough VMEM footprint including double buffering and f32 temporaries."""
    wbuf = 1 if single_k else 2          # weights single-buffered when resident
    est = 2 * tm * Dp * csize            # x tile, double buffered
    est += 2 * tm * Dp * osize           # out tile, double buffered
    est += wbuf * Dp * tk * csize        # W1^T block
    est += wbuf * tk * Dp * csize        # W2^T block
    est += 4 * 8 * Dp * 4                # (sublane-padded) f32 bias blocks
    if use_acc:
        est += tm * Dp * 4               # f32 accumulator scratch
    est += tm * tk * 4                   # f32 hidden temporary (ReLU output)
    est += tm * Dp * 4                   # f32 layer-2 partial temporary
    return est


def prepare_ffn_params(w1, b1, w2, b2, *, compute_dtype=jnp.bfloat16):
    """Hoist the per-call weight layout plumbing out of the hot path:
    transpose PyTorch (out, in) weights to (in, out), cast to the MXU compute
    dtype and pad the feature dim to a multiple of 128 (lane-dense).  Do this
    ONCE for static weights and reuse the result across calls."""
    dim_ff = w1.shape[1]
    compute_dtype = jnp.dtype(compute_dtype)
    Dp = _round_up(dim_ff, 128)
    pad_w = ((0, Dp - dim_ff), (0, Dp - dim_ff))
    return dict(
        w1_t=jnp.pad(w1.T.astype(compute_dtype), pad_w),
        w2_t=jnp.pad(w2.T.astype(compute_dtype), pad_w),
        b1_p=jnp.pad(b1.astype(jnp.float32), (0, Dp - dim_ff)).reshape(1, Dp),
        b2_p=jnp.pad(b2.astype(jnp.float32), (0, Dp - dim_ff)).reshape(1, Dp),
        dim_ff=dim_ff,
        Dp=Dp,
        compute_dtype=compute_dtype,
    )


# -----------------------------------------------------------------------------
# Forward pass
# -----------------------------------------------------------------------------
def feed_forward_block_prepared(x, params, *, tm=None, tk=None):
    """x: (batch, seq, dim_ff); params: output of prepare_ffn_params."""
    w1_t, b1_p = params["w1_t"], params["b1_p"]
    w2_t, b2_p = params["w2_t"], params["b2_p"]
    dim_ff, Dp = params["dim_ff"], params["Dp"]
    compute_dtype = params["compute_dtype"]

    batch, seq, d_in = x.shape
    assert d_in == dim_ff, (d_in, dim_ff)
    out_dtype = x.dtype
    csize = compute_dtype.itemsize
    osize = jnp.dtype(out_dtype).itemsize

    M = batch * seq
    align = 16 if csize <= 2 else 8      # bf16 packs 16 rows per vreg

    # ---- generation-aware VMEM budget (v5e/v6e: 128 MiB, v7x: 64 MiB/TC).
    capacity = _vmem_capacity_bytes()
    cap = max(32 * 1024 * 1024, min(int(0.75 * capacity), 110 * 1024 * 1024))
    budget = max(28 * 1024 * 1024, min(int(0.65 * capacity), 100 * 1024 * 1024))

    # ---- hidden-dim tile (tk): keep full weights VMEM-resident if they fit.
    if tk is None:
        if 2 * Dp * Dp * csize <= budget // 2:
            tk = Dp
        else:
            tk = min(512, Dp)
            while tk > 128 and Dp % tk != 0:
                tk -= 128
    else:
        tk = min(_round_up(tk, 128), Dp)
        while tk > 128 and Dp % tk != 0:
            tk -= 128
    single_k = (tk == Dp)
    use_acc = (not single_k) and (jnp.dtype(out_dtype) != jnp.float32)

    # ---- row tile (tm): prioritize tm over tk when weights are streamed
    # (HBM weight traffic ~ (M/tm) * 2*Dp^2); 256-aligned for MXU occupancy.
    if tm is None:
        tm_cap = 512 if single_k else 2048
        tm = min(tm_cap, _round_up(M, 256)) if M >= 256 else _round_up(M, align)
        while tm > 256 and _vmem_estimate(tm, tk, Dp, csize, osize,
                                          single_k, use_acc) > budget:
            tm = max(256, _round_up(tm // 2, 256))
        while tm > align and _vmem_estimate(tm, tk, Dp, csize, osize,
                                            single_k, use_acc) > budget:
            tm = max(align, _round_up(tm // 2, align))
    else:
        tm = max(align, _round_up(tm, align))
    Mp = _round_up(M, tm)

    est = _vmem_estimate(tm, tk, Dp, csize, osize, single_k, use_acc)
    vmem_limit = int(min(max(int(1.25 * est), 32 * 1024 * 1024), cap))

    # ---- activations: cast + pad (weights were prepared once, outside).
    x_flat = x.reshape(M, dim_ff).astype(compute_dtype)
    x_flat = jnp.pad(x_flat, ((0, Mp - M), (0, Dp - dim_ff)))

    if single_k:
        out_flat = pl.pallas_call(
            _ffn_kernel_single,
            out_shape=jax.ShapeDtypeStruct((Mp, Dp), out_dtype),
            grid_spec=pltpu.PrefetchScalarGridSpec(
                num_scalar_prefetch=0,
                grid=(Mp // tm,),
                in_specs=[
                    _block_spec((tm, Dp), lambda i: (i, 0)),                       # x
                    _block_spec((Dp, Dp), lambda i: (0, 0), single_buffer=True),   # W1^T
                    _block_spec((1, Dp),  lambda i: (0, 0), single_buffer=True),   # b1
                    _block_spec((Dp, Dp), lambda i: (0, 0), single_buffer=True),   # W2^T
                    _block_spec((1, Dp),  lambda i: (0, 0), single_buffer=True),   # b2
                ],
                out_specs=pl.BlockSpec((tm, Dp), lambda i: (i, 0)),
            ),
            compiler_params=pltpu.CompilerParams(
                dimension_semantics=("parallel",),
                vmem_limit_bytes=vmem_limit,
            ),
        )(x_flat, w1_t, b1_p, w2_t, b2_p)
    else:
        kernel = _ffn_kernel_tiled_acc if use_acc else _ffn_kernel_tiled_f32
        scratch = [pltpu.VMEM((tm, Dp), jnp.float32)] if use_acc else []
        out_flat = pl.pallas_call(
            kernel,
            out_shape=jax.ShapeDtypeStruct((Mp, Dp), out_dtype),
            grid_spec=pltpu.PrefetchScalarGridSpec(
                num_scalar_prefetch=0,
                grid=(Mp // tm, Dp // tk),
                in_specs=[
                    _block_spec((tm, Dp), lambda i, k: (i, 0)),                     # x
                    _block_spec((Dp, tk), lambda i, k: (0, k)),                     # W1^T
                    _block_spec((1, tk),  lambda i, k: (0, k)),                     # b1
                    _block_spec((tk, Dp), lambda i, k: (k, 0)),                     # W2^T
                    _block_spec((1, Dp),  lambda i, k: (0, 0), single_buffer=True), # b2
                ],
                out_specs=pl.BlockSpec((tm, Dp), lambda i, k: (i, 0)),
                scratch_shapes=scratch,
            ),
            compiler_params=pltpu.CompilerParams(
                dimension_semantics=("parallel", "arbitrary"),
                vmem_limit_bytes=vmem_limit,
            ),
        )(x_flat, w1_t, b1_p, w2_t, b2_p)

    return out_flat[:M, :dim_ff].reshape(batch, seq, dim_ff)


def feed_forward_block(x, w1, b1, w2, b2, *, mxu_dtype=jnp.bfloat16,
                       tm=None, tk=None):
    """Convenience wrapper.  x: (batch, seq, dim_ff); w1/w2: (dim_ff, dim_ff)
    in PyTorch (out, in) layout; b1/b2: (dim_ff,).
    mxu_dtype defaults to bf16 (native MXU path, f32 accumulation); pass
    jnp.float32 for bit-faithful f32 matmuls.  For static weights, prefer
    prepare_ffn_params() once + feed_forward_block_prepared() per call."""
    params = prepare_ffn_params(w1, b1, w2, b2, compute_dtype=mxu_dtype)
    return feed_forward_block_prepared(x, params, tm=tm, tk=tk)


# -----------------------------------------------------------------------------
# Reference + demo
# -----------------------------------------------------------------------------
def init_params(key, dim_ff, dtype=jnp.float32):
    """Deterministic init mimicking nn.Linear's uniform(-1/sqrt(in), 1/sqrt(in))."""
    k1, k2, k3, k4 = jax.random.split(key, 4)
    bound = 1.0 / (dim_ff ** 0.5)
    w1 = jax.random.uniform(k1, (dim_ff, dim_ff), dtype, -bound, bound)  # (out, in)
    b1 = jax.random.uniform(k2, (dim_ff,), dtype, -bound, bound)
    w2 = jax.random.uniform(k3, (dim_ff, dim_ff), dtype, -bound, bound)  # (out, in)
    b2 = jax.random.uniform(k4, (dim_ff,), dtype, -bound, bound)
    return w1, b1, w2, b2


def _reference(x, w1, b1, w2, b2):
    h = jnp.maximum(jnp.dot(x, w1.T, precision=jax.lax.Precision.HIGHEST) + b1, 0.0)
    return jnp.dot(h, w2.T, precision=jax.lax.Precision.HIGHEST) + b2


if __name__ == "__main__":
    key = jax.random.PRNGKey(0)
    kx, kp, kx2, kp2 = jax.random.split(key, 4)

    # --- small demo shape matching the PyTorch module ------------------------
    batch, seq, dim_ff = 2, 8, 32
    x = jax.random.normal(kx, (batch, seq, dim_ff), jnp.float32)
    w1, b1, w2, b2 = init_params(kp, dim_ff)
    ref = _reference(x, w1, b1, w2, b2)

    # Default path: bf16 MXU operands, f32 accumulation (looser tolerance).
    out_bf16 = jax.block_until_ready(feed_forward_block(x, w1, b1, w2, b2))
    assert out_bf16.shape == (batch, seq, dim_ff)
    assert jnp.allclose(out_bf16, ref, atol=5e-2, rtol=5e-2)

    # Exact-f32 path (bit-level semantics of the PyTorch module).
    out_f32 = jax.block_until_ready(
        feed_forward_block(x, w1, b1, w2, b2, mxu_dtype=jnp.float32))
    assert jnp.allclose(out_f32, ref, atol=1e-5, rtol=1e-5)

    # --- exercise the tiled hidden-dim path + prepared-weights API -----------
    batch2, seq2, dim_ff2 = 2, 64, 256
    x2 = jax.random.normal(kx2, (batch2, seq2, dim_ff2), jnp.float32)
    w1b, b1b, w2b, b2b = init_params(kp2, dim_ff2)
    ref2 = _reference(x2, w1b, b1b, w2b, b2b)

    # f32 MXU, tk=128 forces the tiled-k (accumulate-into-output) kernel.
    out2_f32 = jax.block_until_ready(
        feed_forward_block(x2, w1b, b1b, w2b, b2b, mxu_dtype=jnp.float32, tk=128))
    assert jnp.allclose(out2_f32, ref2, atol=1e-4, rtol=1e-4)

    # bf16 MXU with weights prepared once (hoisted layout plumbing), tiled-k.
    params2 = prepare_ffn_params(w1b, b1b, w2b, b2b, compute_dtype=jnp.bfloat16)
    out2_bf16 = jax.block_until_ready(
        feed_forward_block_prepared(x2, params2, tk=128))
    assert jnp.allclose(out2_bf16, ref2, atol=7.5e-2, rtol=5e-2)

    print("KERNEL_OK")
</pallas_src>

<mosaic_0001>
module attributes {stable_mosaic.version = 11 : i64} {
  func.func @_ffn_kernel_single(%arg0: i32, %arg1: memref<16x128xbf16, #tpu.memory_space<vmem>>, %arg2: memref<128x128xbf16, #tpu.memory_space<vmem>>, %arg3: memref<1x128xf32, #tpu.memory_space<vmem>>, %arg4: memref<128x128xbf16, #tpu.memory_space<vmem>>, %arg5: memref<1x128xf32, #tpu.memory_space<vmem>>, %arg6: memref<16x128xf32, #tpu.memory_space<vmem>>) attributes {dimension_semantics = [#tpu.dimension_semantics<parallel>], iteration_bounds = array<i64: 1>, scalar_prefetch = 0 : i64, scratch_operands = 0 : i64, tpu.core_type = #tpu.core_type<tc>, window_params = [{transform_indices = @transform_0, window_bounds = array<i64: 16, 128>}, {pipeline_mode = #tpu.pipeline_mode<synchronous>, transform_indices = @transform_1, window_bounds = array<i64: 128, 128>}, {pipeline_mode = #tpu.pipeline_mode<synchronous>, transform_indices = @transform_2, window_bounds = array<i64: 1, 128>}, {pipeline_mode = #tpu.pipeline_mode<synchronous>, transform_indices = @transform_3, window_bounds = array<i64: 128, 128>}, {pipeline_mode = #tpu.pipeline_mode<synchronous>, transform_indices = @transform_4, window_bounds = array<i64: 1, 128>}, {transform_indices = @transform_5, window_bounds = array<i64: 16, 128>}]} {
    %c0 = arith.constant 0 : index
    %c0_0 = arith.constant 0 : index
    %0 = vector.load %arg1[%c0, %c0_0] : memref<16x128xbf16, #tpu.memory_space<vmem>>, vector<16x128xbf16>
    %c0_1 = arith.constant 0 : index
    %c0_2 = arith.constant 0 : index
    %1 = vector.load %arg2[%c0_1, %c0_2] : memref<128x128xbf16, #tpu.memory_space<vmem>>, vector<128x128xbf16>
    %cst = arith.constant dense<0.000000e+00> : vector<16x128xf32>
    %2 = tpu.matmul %0, %1, %cst {dimension_numbers = #tpu.dot_dimension_numbers<[1], [0], [0], [1], [0, 0, 1, 1], [], []>} : vector<16x128xbf16>, vector<128x128xbf16>, vector<16x128xf32> -> vector<16x128xf32>
    %c0_3 = arith.constant 0 : index
    %c0_4 = arith.constant 0 : index
    %3 = vector.load %arg3[%c0_3, %c0_4] : memref<1x128xf32, #tpu.memory_space<vmem>>, vector<1x128xf32>
    %4 = vector.broadcast %3 : vector<1x128xf32> to vector<16x128xf32>
    %5 = arith.addf %2, %4 : vector<16x128xf32>
    %cst_5 = arith.constant 0.000000e+00 : f32
    %6 = vector.broadcast %cst_5 : f32 to vector<16x128xf32>
    %7 = arith.maximumf %5, %6 : vector<16x128xf32>
    %8 = arith.truncf %7 : vector<16x128xf32> to vector<16x128xbf16>
    %c0_6 = arith.constant 0 : index
    %c0_7 = arith.constant 0 : index
    %9 = vector.load %arg4[%c0_6, %c0_7] : memref<128x128xbf16, #tpu.memory_space<vmem>>, vector<128x128xbf16>
    %cst_8 = arith.constant dense<0.000000e+00> : vector<16x128xf32>
    %10 = tpu.matmul %8, %9, %cst_8 {dimension_numbers = #tpu.dot_dimension_numbers<[1], [0], [0], [1], [0, 0, 1, 1], [], []>} : vector<16x128xbf16>, vector<128x128xbf16>, vector<16x128xf32> -> vector<16x128xf32>
    %c0_9 = arith.constant 0 : index
    %c0_10 = arith.constant 0 : index
    %11 = vector.load %arg5[%c0_9, %c0_10] : memref<1x128xf32, #tpu.memory_space<vmem>>, vector<1x128xf32>
    %12 = vector.broadcast %11 : vector<1x128xf32> to vector<16x128xf32>
    %13 = arith.addf %10, %12 : vector<16x128xf32>
    %c0_11 = arith.constant 0 : index
    %c0_12 = arith.constant 0 : index
    %14 = vector.load %arg6[%c0_11, %c0_12] : memref<16x128xf32, #tpu.memory_space<vmem>>, vector<16x128xf32>
    tpu.vector_store %arg6[%c0_11, %c0_12], %13 {strides = array<i32>} : memref<16x128xf32, #tpu.memory_space<vmem>>, vector<16x128xf32>,
    return
  }
  func.func @transform_0(%arg0: i32) -> (i32, i32) {
    %c0_i32 = arith.constant 0 : i32
    %c0_i32_0 = arith.constant 0 : i32
    return %arg0, %c0_i32 : i32, i32
  }
  func.func @transform_1(%arg0: i32) -> (i32, i32) {
    %c0_i32 = arith.constant 0 : i32
    %c0_i32_0 = arith.constant 0 : i32
    %c0_i32_1 = arith.constant 0 : i32
    return %c0_i32, %c0_i32_0 : i32, i32
  }
  func.func @transform_2(%arg0: i32) -> (i32, i32) {
    %c0_i32 = arith.constant 0 : i32
    %c0_i32_0 = arith.constant 0 : i32
    %c0_i32_1 = arith.constant 0 : i32
    return %c0_i32, %c0_i32_0 : i32, i32
  }
  func.func @transform_3(%arg0: i32) -> (i32, i32) {
    %c0_i32 = arith.constant 0 : i32
    %c0_i32_0 = arith.constant 0 : i32
    %c0_i32_1 = arith.constant 0 : i32
    return %c0_i32, %c0_i32_0 : i32, i32
  }
  func.func @transform_4(%arg0: i32) -> (i32, i32) {
    %c0_i32 = arith.constant 0 : i32
    %c0_i32_0 = arith.constant 0 : i32
    %c0_i32_1 = arith.constant 0 : i32
    return %c0_i32, %c0_i32_0 : i32, i32
  }
  func.func @transform_5(%arg0: i32) -> (i32, i32) {
    %c0_i32 = arith.constant 0 : i32
    %c0_i32_0 = arith.constant 0 : i32
    return %arg0, %c0_i32 : i32, i32
  }
}

</mosaic_0001>

<llo_original>
// kernel: tpu_custom_call.1
$region0: #{tpu_custom_call.1}
  #allocation0 [shape = 'u32[]', space=smem, size = 0x4, offset = 0x4, fixed_abs, tag = 'smem constant byte address 0x4 - core index']
  #allocation1 [shape = 'u32[72,128]{1,0:T(1,128)}', space=vmem, size = 0x9000, scoped, tag = 'internal scratch']
  %s0 = inlined_call_operand.hbm [shape: bf16[16,128], index: 0, kind: input, shape index: {}]
  %s1 = inlined_call_operand.hbm [shape: bf16[128,128], index: 1, kind: input, shape index: {}]
  %s2 = inlined_call_operand.vmem [shape: f32[1,128], index: 2, kind: input, shape index: {}]
  %s3 = inlined_call_operand.hbm [shape: bf16[128,128], index: 3, kind: input, shape index: {}]
  %s4 = inlined_call_operand.vmem [shape: f32[1,128], index: 4, kind: input, shape index: {}]
  %s5 = inlined_call_operand.hbm [shape: f32[16,128], index: 5, kind: output, shape index: {}]
  %s6 = sld [smem:[#allocation0]]
  $region42: #{tpu_custom_call.1} parent=0
    _
  %s8 = ssub.s32 1, %s6
  %s9 = scalar_select 0, %s8, %s6
  $region1: #{tpu_custom_call.1} parent=0
    #allocation2 [shape = 'u8[4096]{0}', space=vmem, size = 0x1000, scoped, tag = 'input window, operand 0, single buffered']
    #allocation3 [shape = 's32[1]{0}', space=sflag, size = 0x4, scoped, tag = 'scoped memory for tpu_custom_call.1']
    #allocation4 [shape = 's32[1]{0}', space=sflag, size = 0x4, scoped, tag = 'scoped memory for tpu_custom_call.1']
    #allocation5 [shape = 'u8[32768]{0}', space=vmem, size = 0x8000, scoped, tag = 'input window, operand 1, single buffered']
    #allocation6 [shape = 's32[1]{0}', space=sflag, size = 0x4, scoped, tag = 'scoped memory for tpu_custom_call.1']
    #allocation7 [shape = 'u8[32768]{0}', space=vmem, size = 0x8000, scoped, tag = 'input window, operand 3, single buffered']
    #allocation8 [shape = 'u8[8192]{0}', space=vmem, size = 0x2000, scoped, tag = 'output window, operand 0, single buffered']
    %10 = vsyncpa [#allocation3], 0
    %11 = vsyncpa [#allocation6], 0
    %12 = vsyncpa [#allocation4], 0
    // Predicated region
    $region2: #{tpu_custom_call.1} parent=1 // pred_check
      _
    $region3: #{tpu_custom_call.1} parent=1 // pred_check_branch
      %14 = sbr.rel (0) target = $region5
    $region4: #{tpu_custom_call.1} parent=1 // pred_region
      %16 = vsyncadd [#allocation3], 0
      %s17 = sshll.u32 %s0, 4
      %s18 = int_to_ptr.hbm [resolvable:$true] %s17
      %s19 = sshll.u32 [#allocation2], 4
      %s20 = int_to_ptr.vmem [resolvable:$true] %s19
      %25 = dma.hbm_to_vmem [thread:$0]  %s18, 128, %s20, [#allocation3], 64, 64, 4
    $region5: #{tpu_custom_call.1} parent=1 // pred_fallthru
      _
    // Predicated region
    $region6: #{tpu_custom_call.1} parent=1 // pred_check
      _
    $region7: #{tpu_custom_call.1} parent=1 // pred_check_branch
      %27 = sbr.rel (0) target = $region9
    $region8: #{tpu_custom_call.1} parent=1 // pred_region
      %29 = vsyncadd [#allocation6], 0
      %s30 = sshll.u32 %s1, 4
      %s31 = int_to_ptr.hbm [resolvable:$true] %s30
      %s32 = sshll.u32 [#allocation5], 4
      %s33 = int_to_ptr.vmem [resolvable:$true] %s32
      %38 = dma.hbm_to_vmem [thread:$0]  %s31, 1024, %s33, [#allocation6], 64, 64, 4
    $region9: #{tpu_custom_call.1} parent=1 // pred_fallthru
      _
    // Predicated region
    $region10: #{tpu_custom_call.1} parent=1 // pred_check
      _
    $region11: #{tpu_custom_call.1} parent=1 // pred_check_branch
      %40 = sbr.rel (0) target = $region13
    $region12: #{tpu_custom_call.1} parent=1 // pred_region
      _
    $region13: #{tpu_custom_call.1} parent=1 // pred_fallthru
      _
    // Predicated region
    $region14: #{tpu_custom_call.1} parent=1 // pred_check
      _
    $region15: #{tpu_custom_call.1} parent=1 // pred_check_branch
      %42 = sbr.rel (0) target = $region17
    $region16: #{tpu_custom_call.1} parent=1 // pred_region
      %44 = vsyncadd [#allocation6], 0
      %s45 = sshll.u32 %s3, 4
      %s46 = int_to_ptr.hbm [resolvable:$true] %s45
      %s47 = sshll.u32 [#allocation7], 4
      %s48 = int_to_ptr.vmem [resolvable:$true] %s47
      %53 = dma.hbm_to_vmem [thread:$0]  %s46, 1024, %s48, [#allocation6], 64, 64, 4
    $region17: #{tpu_custom_call.1} parent=1 // pred_fallthru
      _
    // Predicated region
    $region18: #{tpu_custom_call.1} parent=1 // pred_check
      _
    $region19: #{tpu_custom_call.1} parent=1 // pred_check_branch
      %55 = sbr.rel (0) target = $region21
    $region20: #{tpu_custom_call.1} parent=1 // pred_region
      _
    $region21: #{tpu_custom_call.1} parent=1 // pred_fallthru
      _
    // Predicated region
    $region22: #{tpu_custom_call.1} parent=1 // pred_check
      _
    $region23: #{tpu_custom_call.1} parent=1 // pred_check_branch
      %57 = sbr.rel (0) target = $region25
    $region24: #{tpu_custom_call.1} parent=1 // pred_region
      %59 = dma.done [#allocation3], 128
    $region25: #{tpu_custom_call.1} parent=1 // pred_fallthru
      _
    // Predicated region
    $region26: #{tpu_custom_call.1} parent=1 // pred_check
      _
    $region27: #{tpu_custom_call.1} parent=1 // pred_check_branch
      %61 = sbr.rel (0) target = $region29
    $region28: #{tpu_custom_call.1} parent=1 // pred_region
      %63 = dma.done [#allocation6], 1024
    $region29: #{tpu_custom_call.1} parent=1 // pred_fallthru
      _
    // Predicated region
    $region30: #{tpu_custom_call.1} parent=1 // pred_check
      _
    $region31: #{tpu_custom_call.1} parent=1 // pred_check_branch
      %65 = sbr.rel (0) target = $region33
    $region32: #{tpu_custom_call.1} parent=1 // pred_region
      %67 = dma.done [#allocation6], 1024
    $region33: #{tpu_custom_call.1} parent=1 // pred_fallthru
      _
    %v68 = vld [vmem:[#allocation2] sm:$0xf]
    %v69 = vld [vmem:[#allocation2 + $0x4] sm:$0xf]
    %v70 = vld [vmem:[#allocation5] sm:$0xf]
    %v71 = vld [vmem:[#allocation5 + $0x4] sm:$0xf]
    %v72 = vld [vmem:[#allocation5 + $0x8] sm:$0xf]
    %v73 = vld [vmem:[#allocation5 + $0xc] sm:$0xf]
    %v74 = vld [vmem:[#allocation5 + $0x10] sm:$0xf]
    %v75 = vld [vmem:[#allocation5 + $0x14] sm:$0xf]
    %v76 = vld [vmem:[#allocation5 + $0x18] sm:$0xf]
    %v77 = vld [vmem:[#allocation5 + $0x1c] sm:$0xf]
    %v78 = vld [vmem:[#allocation5 + $0x20] sm:$0xf]
    %v79 = vld [vmem:[#allocation5 + $0x24] sm:$0xf]
    %v80 = vld [vmem:[#allocation5 + $0x28] sm:$0xf]
    %v81 = vld [vmem:[#allocation5 + $0x2c] sm:$0xf]
    %v82 = vld [vmem:[#allocation5 + $0x30] sm:$0xf]
    %v83 = vld [vmem:[#allocation5 + $0x34] sm:$0xf]
    %v84 = vld [vmem:[#allocation5 + $0x38] sm:$0xf]
    %v85 = vld [vmem:[#allocation5 + $0x3c] sm:$0xf]
    %v86 = vld [vmem:[%s2] sm:$0x1]
    %v88 = vperm.slane %v86, 0
    %v92 = vunpack.c.l.b16 %v68
    %v93 = vunpack.c.l.b16 %v69
    %v94 = vpack.c.b16 %v93, %v92
    %v112 = vunpack.c.l.b16 %v70
    %v113 = vunpack.c.l.b16 %v71
    %v114 = vunpack.c.l.b16 %v72
    %v115 = vunpack.c.l.b16 %v73
    %v116 = vunpack.c.l.b16 %v74
    %v117 = vunpack.c.l.b16 %v75
    %v118 = vunpack.c.l.b16 %v76
    %v119 = vunpack.c.l.b16 %v77
    %v120 = vunpack.c.l.b16 %v78
    %v121 = vunpack.c.l.b16 %v79
    %v122 = vunpack.c.l.b16 %v80
    %v123 = vunpack.c.l.b16 %v81
    %v124 = vunpack.c.l.b16 %v82
    %v125 = vunpack.c.l.b16 %v83
    %v126 = vunpack.c.l.b16 %v84
    %v127 = vunpack.c.l.b16 %v85
    %v128 = vpack.c.b16 %v113, %v112
    %v129 = vpack.c.b16 %v115, %v114
    %v130 = vpack.c.b16 %v117, %v116
    %v131 = vpack.c.b16 %v119, %v118
    %v132 = vpack.c.b16 %v121, %v120
    %v133 = vpack.c.b16 %v123, %v122
    %v134 = vpack.c.b16 %v125, %v124
    %v135 = vpack.c.b16 %v127, %v126
    %144 = vmatpush.bf16.msra.mxu0 %v135
    %145 = vmatpush.bf16.msra.mxu0 %v134
    %146 = vmatpush.bf16.msra.mxu0 %v133
    %147 = vmatpush.bf16.msra.mxu0 %v132
    %148 = vmatpush.bf16.msra.mxu0 %v131
    %149 = vmatpush.bf16.msra.mxu0 %v130
    %150 = vmatpush.bf16.msra.mxu0 %v129
    %151 = vmatpush.bf16.msra.mxu0 %v128
    %152 = vmatmul.bf16.gmra.mxu0 %v94
    %v153 = vpop.f32.mrf.mxu0
    %v154 = vadd.f32 %v88, %v153
    %v155 = vpop.f32.mrf.mxu0
    %v156 = vadd.f32 %v88, %v155
    %157 = vdwg.mxu0
    %v158 = vmax.f32 %v154, 0.0
    %v159 = vmax.f32 %v156, 0.0
    %v160 = vpack.c.bf16 %v159, %v158
    %v161 = vld [vmem:[#allocation7] sm:$0xf]
    %v162 = vld [vmem:[#allocation7 + $0x4] sm:$0xf]
    %v163 = vld [vmem:[#allocation7 + $0x8] sm:$0xf]
    %v164 = vld [vmem:[#allocation7 + $0xc] sm:$0xf]
    %v165 = vld [vmem:[#allocation7 + $0x10] sm:$0xf]
    %v166 = vld [vmem:[#allocation7 + $0x14] sm:$0xf]
    %v167 = vld [vmem:[#allocation7 + $0x18] sm:$0xf]
    %v168 = vld [vmem:[#allocation7 + $0x1c] sm:$0xf]
    %v169 = vld [vmem:[#allocation7 + $0x20] sm:$0xf]
    %v170 = vld [vmem:[#allocation7 + $0x24] sm:$0xf]
    %v171 = vld [vmem:[#allocation7 + $0x28] sm:$0xf]
    %v172 = vld [vmem:[#allocation7 + $0x2c] sm:$0xf]
    %v173 = vld [vmem:[#allocation7 + $0x30] sm:$0xf]
    %v174 = vld [vmem:[#allocation7 + $0x34] sm:$0xf]
    %v175 = vld [vmem:[#allocation7 + $0x38] sm:$0xf]
    %v176 = vld [vmem:[#allocation7 + $0x3c] sm:$0xf]
    %v177 = vld [vmem:[%s4] sm:$0x1]
    %v179 = vperm.slane %v177, 0
    %v197 = vunpack.c.l.b16 %v161
    %v198 = vunpack.c.l.b16 %v162
    %v199 = vunpack.c.l.b16 %v163
    %v200 = vunpack.c.l.b16 %v164
    %v201 = vunpack.c.l.b16 %v165
    %v202 = vunpack.c.l.b16 %v166
    %v203 = vunpack.c.l.b16 %v167
    %v204 = vunpack.c.l.b16 %v168
    %v205 = vunpack.c.l.b16 %v169
    %v206 = vunpack.c.l.b16 %v170
    %v207 = vunpack.c.l.b16 %v171
    %v208 = vunpack.c.l.b16 %v172
    %v209 = vunpack.c.l.b16 %v173
    %v210 = vunpack.c.l.b16 %v174
    %v211 = vunpack.c.l.b16 %v175
    %v212 = vunpack.c.l.b16 %v176
    %v213 = vpack.c.b16 %v198, %v197
    %v214 = vpack.c.b16 %v200, %v199
    %v215 = vpack.c.b16 %v202, %v201
    %v216 = vpack.c.b16 %v204, %v203
    %v217 = vpack.c.b16 %v206, %v205
    %v218 = vpack.c.b16 %v208, %v207
    %v219 = vpack.c.b16 %v210, %v209
    %v220 = vpack.c.b16 %v212, %v211
    %229 = vmatpush.bf16.msra.mxu0 %v220
    %230 = vmatpush.bf16.msra.mxu0 %v219
    %231 = vmatpush.bf16.msra.mxu0 %v218
    %232 = vmatpush.bf16.msra.mxu0 %v217
    %233 = vmatpush.bf16.msra.mxu0 %v216
    %234 = vmatpush.bf16.msra.mxu0 %v215
    %235 = vmatpush.bf16.msra.mxu0 %v214
    %236 = vmatpush.bf16.msra.mxu0 %v213
    %237 = vmatmul.bf16.gmra.mxu0 %v160
    %v238 = vpop.f32.mrf.mxu0
    %v239 = vadd.f32 %v179, %v238
    %v240 = vpop.f32.mrf.mxu0
    %v241 = vadd.f32 %v179, %v240
    %242 = vdwg.mxu0
    %243 = vst [vmem:[#allocation8] sm:$0xff] %v239
    %244 = vst [vmem:[#allocation8 + $0x8] sm:$0xff] %v241
    // Predicated region
    $region34: #{tpu_custom_call.1} parent=1 // pred_check
      _
    $region35: #{tpu_custom_call.1} parent=1 // pred_check_branch
      %246 = sbr.rel (0) target = $region37
    $region36: #{tpu_custom_call.1} parent=1 // pred_region
      %248 = vsyncadd [#allocation4], 0
      %s249 = sshll.u32 [#allocation8], 4
      %s250 = int_to_ptr.vmem [resolvable:$true] %s249
      %s251 = sshll.u32 %s5, 4
      %s252 = int_to_ptr.hbm [resolvable:$true] %s251
      %257 = dma.vmem_to_hbm [thread:$0]  %s250, 256, %s252, [#allocation4], 128, 128, 8
    $region37: #{tpu_custom_call.1} parent=1 // pred_fallthru
      _
    // Predicated region
    $region38: #{tpu_custom_call.1} parent=1 // pred_check
      _
    $region39: #{tpu_custom_call.1} parent=1 // pred_check_branch
      %259 = sbr.rel (0) target = $region41
    $region40: #{tpu_custom_call.1} parent=1 // pred_region
      %261 = dma.done [#allocation4], 256
    $region41: #{tpu_custom_call.1} parent=1 // pred_fallthru
      _
    %262 = vsyncpa [#allocation3], 1
    %263 = vsyncpa [#allocation6], 1
    %264 = vsyncpa [#allocation4], 1

</llo_original>
